<compile_context>
chip_gen: v6e
topology: v6e:2x2x1
jax: 0.10.0
libtpu: 0.0.40
codegen_flags: <defaults>
</compile_context>

<pallas_src>
import functools
import math

import jax
import jax.numpy as jnp
import numpy as np
from jax.experimental import pallas as pl
from jax.experimental.pallas import tpu as pltpu


# --------------------------- fused QKV projection ----------------------------

def _qkv_proj_kernel(x_ref, w_ref, q_ref, k_ref, v_ref, acc_ref, *, n_rep, head_dim):
    """One (batch, s-tile, kv-group) step; contraction over H tiled on axis 3."""
    kc = pl.program_id(3)

    @pl.when(kc == 0)
    def _():
        acc_ref[...] = jnp.zeros_like(acc_ref)

    acc_ref[...] += jnp.dot(x_ref[...], w_ref[...],
                            preferred_element_type=jnp.float32)

    @pl.when(kc == pl.num_programs(3) - 1)
    def _():
        nrd = n_rep * head_dim
        acc = acc_ref[...]
        q_ref[...] = acc[:, :nrd].astype(q_ref.dtype)                 # (ts, n_rep*D)
        k_ref[...] = acc[:, nrd:nrd + head_dim].astype(k_ref.dtype)   # (ts, D)
        v_ref[...] = acc[:, nrd + head_dim:].astype(v_ref.dtype)      # (ts, D)


# -------------------- grouped-head flash attention kernel --------------------

def _attn_kernel(scale_ref, q_ref, k_ref, v_ref, mask_ref, o_ref,
                 m_sc, l_sc, acc_sc, *, n_rep, head_dim):
    """One (batch, kv-head, q-tile) output tile; online softmax over kv tiles."""
    g = pl.program_id(1)
    ki = pl.program_id(3)

    @pl.when(ki == 0)
    def _():
        m_sc[...] = jnp.full_like(m_sc, -jnp.inf)
        l_sc[...] = jnp.zeros_like(l_sc)
        acc_sc[...] = jnp.zeros_like(acc_sc)

    q_all = q_ref[...]                          # (tq, n_rep*D) - this KV-group's Q heads
    k_t = k_ref[...]                            # (tk, D)
    v_t = v_ref[...]                            # (tk, D)
    mask = mask_ref[...].astype(jnp.float32)    # (tq, tk) additive mask

    for j in range(n_rep):                      # static loop over grouped query heads
        # per-head scale = logn[h] / sqrt(D), f32 scalar from SMEM (h = g*n_rep + j)
        sc = scale_ref[g * n_rep + j]
        q_j = (q_all[:, j * head_dim:(j + 1) * head_dim] * sc).astype(q_all.dtype)

        # QK^T without transposing K: contract last dim of both operands on the MXU.
        s = jax.lax.dot_general(
            q_j, k_t, dimension_numbers=(((1,), (1,)), ((), ())),
            preferred_element_type=jnp.float32)
        s = s + mask                            # (tq, tk) f32

        m_prev = m_sc[j]                                            # (tq, 1)
        m_new = jnp.maximum(m_prev, jnp.max(s, axis=-1, keepdims=True))
        alpha = jnp.exp(m_prev - m_new)
        p = jnp.exp(s - m_new)                                      # f32 softmax numerator
        l_sc[j] = alpha * l_sc[j] + jnp.sum(p, axis=-1, keepdims=True)
        pv = jnp.dot(p.astype(v_t.dtype), v_t, preferred_element_type=jnp.float32)
        acc_sc[j] = alpha * acc_sc[j] + pv
        m_sc[j] = m_new

    @pl.when(ki == pl.num_programs(3) - 1)
    def _():
        # normalize once per q-tile (cheap: (tq, D) per head) and emit one
        # lane-dense (tq, n_rep*D) store straight into the (B, S, H) output layout.
        parts = [acc_sc[j] * (1.0 / l_sc[j]) for j in range(n_rep)]
        o_ref[...] = jnp.concatenate(parts, axis=-1).astype(o_ref.dtype)


# --------------------------------- wrapper -----------------------------------

def cheems_non_wo_attention(hidden_states, attention_mask, wq_t, wk_t, wv_t,
                            num_heads, num_key_value_heads,
                            *, block_q=128, block_kv=128, block_s=128, block_h=128):
    B, S, H = hidden_states.shape
    D = H // num_heads
    G = num_key_value_heads
    n_rep = num_heads // G
    nrd = n_rep * D
    d_out = nrd + 2 * D
    dtype = hidden_states.dtype
    itemsize = jnp.dtype(dtype).itemsize

    tq = min(block_q, S)
    tk = min(block_kv, S)
    ts = min(block_s, S)
    th = min(block_h, H)
    assert S % tq == 0 and S % tk == 0 and S % ts == 0 and H % th == 0
    # grouped Q / output tiles must be lane-dense (or cover the full hidden dim)
    assert nrd % 128 == 0 or nrd == H, "n_rep * head_dim must be a multiple of 128"

    # one-time weight packing (would be precomputed in a real model):
    # per KV group g the fused weight is [Wq_g | Wk_g | Wv_g]  -> (G, H, n_rep*D + 2D)
    wq_g = wq_t.reshape(H, G, nrd).transpose(1, 0, 2)
    wk_g = wk_t.reshape(H, G, D).transpose(1, 0, 2)
    wv_g = wv_t.reshape(H, G, D).transpose(1, 0, 2)
    w_cat = jnp.concatenate([wq_g, wk_g, wv_g], axis=-1)

    proj_cost = pl.CostEstimate(
        flops=int(2 * B * S * H * G * d_out),
        transcendentals=0,
        bytes_accessed=int(itemsize * (G * B * S * H + B * G * H * d_out
                                       + B * S * H + 2 * B * G * S * D)))

    # ---- fused, tiled QKV projection ----
    q, k, v = pl.pallas_call(
        functools.partial(_qkv_proj_kernel, n_rep=n_rep, head_dim=D),
        out_shape=(jax.ShapeDtypeStruct((B, S, H), dtype),        # Q, attention-ready
                   jax.ShapeDtypeStruct((B, G, S, D), dtype),     # K per kv-head
                   jax.ShapeDtypeStruct((B, G, S, D), dtype)),    # V per kv-head
        grid=(B, S // ts, G, H // th),
        in_specs=[
            pl.BlockSpec((None, ts, th), lambda b, si, g, kc: (b, si, kc)),     # x
            pl.BlockSpec((None, th, d_out), lambda b, si, g, kc: (g, kc, 0)),   # fused W
        ],
        out_specs=(
            pl.BlockSpec((None, ts, nrd), lambda b, si, g, kc: (b, si, g)),
            pl.BlockSpec((None, None, ts, D), lambda b, si, g, kc: (b, g, si, 0)),
            pl.BlockSpec((None, None, ts, D), lambda b, si, g, kc: (b, g, si, 0)),
        ),
        scratch_shapes=[pltpu.VMEM((ts, d_out), jnp.float32)],
        compiler_params=pltpu.CompilerParams(
            dimension_semantics=("parallel", "parallel", "parallel", "arbitrary"),
            vmem_limit_bytes=32 * 1024 * 1024),
        cost_estimate=proj_cost,
    )(hidden_states, w_cat)

    # ---- per-head scale: reference logn quirk ("lengths" are head counts), kept f32,
    #      folded with 1/sqrt(head_dim) so the S^2 score tile is never divided ----
    offset = 64
    query_length = num_heads       # query_states.size(1) AFTER the transpose == num_heads
    key_length = num_heads
    logn = jnp.arange(offset + 1, offset + key_length + 1, dtype=jnp.float32)[-query_length:]
    logn = jnp.maximum(jnp.log(logn) / jnp.log(jnp.float32(256.0)), 1.0)
    scale = (logn / jnp.float32(math.sqrt(D))).astype(jnp.float32)   # (num_heads,) f32

    attn_cost = pl.CostEstimate(
        flops=int(4 * B * num_heads * S * S * D),
        transcendentals=int(B * num_heads * S * S),
        bytes_accessed=int(itemsize * (2 * B * S * H + 2 * n_rep * B * G * S * D)
                           + 4 * B * G * S * S))

    # ---- flash attention over (batch, kv-head, q-tile, kv-tile) ----
    attn_out = pl.pallas_call(
        functools.partial(_attn_kernel, n_rep=n_rep, head_dim=D),
        out_shape=jax.ShapeDtypeStruct((B, S, H), dtype),
        grid=(B, G, S // tq, S // tk),
        in_specs=[
            pl.BlockSpec(memory_space=pltpu.MemorySpace.SMEM),                         # scale
            pl.BlockSpec((None, tq, nrd), lambda b, g, qi, ki: (b, qi, g)),            # q
            pl.BlockSpec((None, None, tk, D), lambda b, g, qi, ki: (b, g, ki, 0)),     # k
            pl.BlockSpec((None, None, tk, D), lambda b, g, qi, ki: (b, g, ki, 0)),     # v
            pl.BlockSpec((None, None, tq, tk), lambda b, g, qi, ki: (b, 0, qi, ki)),   # mask
        ],
        out_specs=pl.BlockSpec((None, tq, nrd), lambda b, g, qi, ki: (b, qi, g)),
        scratch_shapes=[
            pltpu.VMEM((n_rep, tq, 1), jnp.float32),   # running max m
            pltpu.VMEM((n_rep, tq, 1), jnp.float32),   # running denom l
            pltpu.VMEM((n_rep, tq, D), jnp.float32),   # running numerator acc
        ],
        compiler_params=pltpu.CompilerParams(
            dimension_semantics=("parallel", "parallel", "parallel", "arbitrary"),
            vmem_limit_bytes=32 * 1024 * 1024),
        cost_estimate=attn_cost,
    )(scale, q, k, v, attention_mask)

    return attn_out    # already (B, S, H): no post-attention transpose/reshape needed


# -------------------------------- reference ----------------------------------

def _reference(hidden_states, attention_mask, wq_t, wk_t, wv_t, num_heads, num_kv_heads):
    B, S, H = hidden_states.shape
    D = H // num_heads
    n_rep = num_heads // num_kv_heads
    q = hidden_states @ wq_t
    k = hidden_states @ wk_t
    v = hidden_states @ wv_t
    q = q.reshape(B, S, num_heads, D).transpose(0, 2, 1, 3)
    k = k.reshape(B, S, num_kv_heads, D).transpose(0, 2, 1, 3)
    v = v.reshape(B, S, num_kv_heads, D).transpose(0, 2, 1, 3)
    k = jnp.repeat(k, n_rep, axis=1)
    v = jnp.repeat(v, n_rep, axis=1)
    offset = 64
    logn = jnp.arange(offset + 1, offset + num_heads + 1, dtype=jnp.float32)[-num_heads:]
    logn = jnp.maximum(jnp.log(logn) / jnp.log(jnp.float32(256.0)), 1.0)
    q = q * logn.reshape(1, num_heads, 1, 1)
    w = jnp.einsum("bhqd,bhkd->bhqk", q, k) / math.sqrt(D)
    w = w + attention_mask
    w = jax.nn.softmax(w.astype(jnp.float32), axis=-1).astype(q.dtype)
    o = jnp.einsum("bhqk,bhkd->bhqd", w, v)
    return o.transpose(0, 2, 1, 3).reshape(B, S, H)


# ---------------------------------- main --------------------------------------

if __name__ == "__main__":
    # small but TPU-shaped config: hidden=256, heads=4, kv_heads=2 -> head_dim=64,
    # n_rep*head_dim=128 (lane-dense), batch=2, seq=256 (2 q-tiles x 2 kv-tiles).
    B, S, H = 2, 256, 256
    num_heads, num_kv_heads = 4, 2
    D = H // num_heads

    key = jax.random.PRNGKey(0)
    kx, kq, kk, kv = jax.random.split(key, 4)
    x = jax.random.normal(kx, (B, S, H), dtype=jnp.float32)

    # deterministic weights, stored pre-transposed as (in, out) so y = x @ W
    wq_t = (0.02 * jax.random.normal(kq, (H, num_heads * D))).astype(jnp.float32)
    wk_t = (0.02 * jax.random.normal(kk, (H, num_kv_heads * D))).astype(jnp.float32)
    wv_t = (0.02 * jax.random.normal(kv, (H, num_kv_heads * D))).astype(jnp.float32)

    # additive causal attention mask of shape (B, 1, S, S), like the torch call site
    causal = jnp.where(jnp.tril(jnp.ones((S, S), dtype=bool)), 0.0, -1e9).astype(jnp.float32)
    attention_mask = jnp.broadcast_to(causal, (B, 1, S, S))

    out = cheems_non_wo_attention(x, attention_mask, wq_t, wk_t, wv_t,
                                  num_heads, num_kv_heads)
    out = jax.block_until_ready(out)

    ref = _reference(x, attention_mask, wq_t, wk_t, wv_t, num_heads, num_kv_heads)
    np.testing.assert_allclose(np.asarray(out), np.asarray(ref), rtol=1e-4, atol=1e-4)

    print("KERNEL_OK")
</pallas_src>

<mosaic_0001>
module attributes {stable_mosaic.version = 11 : i64} {
  func.func @_qkv_proj_kernel(%arg0: i32, %arg1: i32, %arg2: i32, %arg3: i32, %arg4: memref<1x128x128xf32, #tpu.memory_space<vmem>>, %arg5: memref<1x128x256xf32, #tpu.memory_space<vmem>>, %arg6: memref<1x128x128xf32, #tpu.memory_space<vmem>>, %arg7: memref<1x1x128x64xf32, #tpu.memory_space<vmem>>, %arg8: memref<1x1x128x64xf32, #tpu.memory_space<vmem>>, %arg9: memref<128x256xf32, #tpu.memory_space<vmem>>) attributes {dimension_semantics = [#tpu.dimension_semantics<parallel>, #tpu.dimension_semantics<parallel>, #tpu.dimension_semantics<parallel>, #tpu.dimension_semantics<arbitrary>], iteration_bounds = array<i64: 2, 2, 2, 2>, scalar_prefetch = 0 : i64, scratch_operands = 1 : i64, tpu.core_type = #tpu.core_type<tc>, window_params = [{transform_indices = @transform_0, window_bounds = array<i64: 1, 128, 128>}, {transform_indices = @transform_1, window_bounds = array<i64: 1, 128, 256>}, {transform_indices = @transform_2, window_bounds = array<i64: 1, 128, 128>}, {transform_indices = @transform_3, window_bounds = array<i64: 1, 1, 128, 64>}, {transform_indices = @transform_4, window_bounds = array<i64: 1, 1, 128, 64>}]} {
    %c0_i32 = arith.constant 0 : i32
    %0 = arith.cmpi eq, %arg3, %c0_i32 : i32
    %1 = arith.extui %0 : i1 to i32
    %c0_i32_0 = arith.constant 0 : i32
    %2 = arith.cmpi ne, %1, %c0_i32_0 : i32
    scf.if %2 {
      %cst_11 = arith.constant 0.000000e+00 : f32
      %14 = vector.broadcast %cst_11 : f32 to vector<128x256xf32>
      %c0_12 = arith.constant 0 : index
      %c0_13 = arith.constant 0 : index
      %15 = vector.load %arg9[%c0_12, %c0_13] : memref<128x256xf32, #tpu.memory_space<vmem>>, vector<128x256xf32>
      tpu.vector_store %arg9[%c0_12, %c0_13], %14 {strides = array<i32>} : memref<128x256xf32, #tpu.memory_space<vmem>>, vector<128x256xf32>,
    } else {
    }
    %c0 = arith.constant 0 : index
    %c0_1 = arith.constant 0 : index
    %3 = vector.load %arg9[%c0, %c0_1] : memref<128x256xf32, #tpu.memory_space<vmem>>, vector<128x256xf32>
    %c0_2 = arith.constant 0 : index
    %c0_3 = arith.constant 0 : index
    %c0_4 = arith.constant 0 : index
    %4 = vector.load %arg4[%c0_2, %c0_3, %c0_4] : memref<1x128x128xf32, #tpu.memory_space<vmem>>, vector<1x128x128xf32>
    %5 = vector.shape_cast %4 : vector<1x128x128xf32> to vector<128x128xf32>
    %c0_5 = arith.constant 0 : index
    %c0_6 = arith.constant 0 : index
    %c0_7 = arith.constant 0 : index
    %6 = vector.load %arg5[%c0_5, %c0_6, %c0_7] : memref<1x128x256xf32, #tpu.memory_space<vmem>>, vector<1x128x256xf32>
    %7 = vector.shape_cast %6 : vector<1x128x256xf32> to vector<128x256xf32>
    %cst = arith.constant dense<0.000000e+00> : vector<128x256xf32>
    %8 = tpu.matmul %5, %7, %cst {dimension_numbers = #tpu.dot_dimension_numbers<[1], [0], [0], [1], [0, 0, 1, 1], [], []>} : vector<128x128xf32>, vector<128x256xf32>, vector<128x256xf32> -> vector<128x256xf32>
    %9 = arith.addf %3, %8 : vector<128x256xf32>
    %c0_8 = arith.constant 0 : index
    %c0_9 = arith.constant 0 : index
    %10 = vector.load %arg9[%c0_8, %c0_9] : memref<128x256xf32, #tpu.memory_space<vmem>>, vector<128x256xf32>
    tpu.vector_store %arg9[%c0_8, %c0_9], %9 {strides = array<i32>} : memref<128x256xf32, #tpu.memory_space<vmem>>, vector<128x256xf32>,
    %c1_i32 = arith.constant 1 : i32
    %11 = arith.cmpi eq, %arg3, %c1_i32 : i32
    %12 = arith.extui %11 : i1 to i32
    %c0_i32_10 = arith.constant 0 : i32
    %13 = arith.cmpi ne, %12, %c0_i32_10 : i32
    scf.if %13 {
      %c0_11 = arith.constant 0 : index
      %c0_12 = arith.constant 0 : index
      %14 = vector.load %arg9[%c0_11, %c0_12] : memref<128x256xf32, #tpu.memory_space<vmem>>, vector<128x256xf32>
      %15 = vector.extract_strided_slice %14 {offsets = [0, 0], sizes = [128, 128], strides = [1, 1]} : vector<128x256xf32> to vector<128x128xf32>
      %c0_13 = arith.constant 0 : index
      %c0_14 = arith.constant 0 : index
      %c0_15 = arith.constant 0 : index
      %16 = vector.load %arg6[%c0_13, %c0_14, %c0_15] : memref<1x128x128xf32, #tpu.memory_space<vmem>>, vector<1x128x128xf32>
      %17 = vector.shape_cast %16 : vector<1x128x128xf32> to vector<128x128xf32>
      %18 = vector.shape_cast %15 : vector<128x128xf32> to vector<1x128x128xf32>
      tpu.vector_store %arg6[%c0_13, %c0_14, %c0_15], %18 {strides = array<i32>} : memref<1x128x128xf32, #tpu.memory_space<vmem>>, vector<1x128x128xf32>,
      %19 = vector.extract_strided_slice %14 {offsets = [0, 128], sizes = [128, 64], strides = [1, 1]} : vector<128x256xf32> to vector<128x64xf32>
      %c0_16 = arith.constant 0 : index
      %c0_17 = arith.constant 0 : index
      %c0_18 = arith.constant 0 : index
      %c0_19 = arith.constant 0 : index
      %20 = vector.load %arg7[%c0_16, %c0_17, %c0_18, %c0_19] : memref<1x1x128x64xf32, #tpu.memory_space<vmem>>, vector<1x1x128x64xf32>
      %21 = vector.shape_cast %20 : vector<1x1x128x64xf32> to vector<128x64xf32>
      %22 = vector.shape_cast %19 : vector<128x64xf32> to vector<1x1x128x64xf32>
      tpu.vector_store %arg7[%c0_16, %c0_17, %c0_18, %c0_19], %22 {strides = array<i32>} : memref<1x1x128x64xf32, #tpu.memory_space<vmem>>, vector<1x1x128x64xf32>,
      %23 = vector.extract_strided_slice %14 {offsets = [0, 192], sizes = [128, 64], strides = [1, 1]} : vector<128x256xf32> to vector<128x64xf32>
      %c0_20 = arith.constant 0 : index
      %c0_21 = arith.constant 0 : index
      %c0_22 = arith.constant 0 : index
      %c0_23 = arith.constant 0 : index
      %24 = vector.load %arg8[%c0_20, %c0_21, %c0_22, %c0_23] : memref<1x1x128x64xf32, #tpu.memory_space<vmem>>, vector<1x1x128x64xf32>
      %25 = vector.shape_cast %24 : vector<1x1x128x64xf32> to vector<128x64xf32>
      %26 = vector.shape_cast %23 : vector<128x64xf32> to vector<1x1x128x64xf32>
      tpu.vector_store %arg8[%c0_20, %c0_21, %c0_22, %c0_23], %26 {strides = array<i32>} : memref<1x1x128x64xf32, #tpu.memory_space<vmem>>, vector<1x1x128x64xf32>,
    } else {
    }
    return
  }
  func.func @transform_0(%arg0: i32, %arg1: i32, %arg2: i32, %arg3: i32) -> (i32, i32, i32) {
    %c0_i32 = arith.constant 0 : i32
    return %arg0, %arg1, %arg3 : i32, i32, i32
  }
  func.func @transform_1(%arg0: i32, %arg1: i32, %arg2: i32, %arg3: i32) -> (i32, i32, i32) {
    %c0_i32 = arith.constant 0 : i32
    %c0_i32_0 = arith.constant 0 : i32
    return %arg2, %arg3, %c0_i32 : i32, i32, i32
  }
  func.func @transform_2(%arg0: i32, %arg1: i32, %arg2: i32, %arg3: i32) -> (i32, i32, i32) {
    %c0_i32 = arith.constant 0 : i32
    return %arg0, %arg1, %arg2 : i32, i32, i32
  }
  func.func @transform_3(%arg0: i32, %arg1: i32, %arg2: i32, %arg3: i32) -> (i32, i32, i32, i32) {
    %c0_i32 = arith.constant 0 : i32
    %c0_i32_0 = arith.constant 0 : i32
    return %arg0, %arg2, %arg1, %c0_i32 : i32, i32, i32, i32
  }
  func.func @transform_4(%arg0: i32, %arg1: i32, %arg2: i32, %arg3: i32) -> (i32, i32, i32, i32) {
    %c0_i32 = arith.constant 0 : i32
    %c0_i32_0 = arith.constant 0 : i32
    return %arg0, %arg2, %arg1, %c0_i32 : i32, i32, i32, i32
  }
}

</mosaic_0001>

<llo_original>
// kernel: tpu_custom_call.1
$region0: #{tpu_custom_call.1}
  #allocation0 [shape = 'u32[]', space=smem, size = 0x4, offset = 0x4, fixed_abs, tag = 'smem constant byte address 0x4 - core index']
  #allocation1 [shape = 'u32[144,128]{1,0:T(1,128)}', space=vmem, size = 0x12000, scoped, tag = 'internal scratch']
  #allocation2 [shape = 'f32[128,256]{1,0:T(8,128)}', space=vmem, size = 0x20000, scoped, tag = 'scratch operand']
  %s0 = inlined_call_operand.hbm [shape: f32[2,256,256], index: 0, kind: input, shape index: {}]
  %s1 = inlined_call_operand.hbm [shape: f32[2,256,256], index: 1, kind: input, shape index: {}]
  %s2 = inlined_call_operand.hbm [shape: f32[2,256,256], index: 2, kind: output, shape index: {0}]
  %s3 = inlined_call_operand.vmem [shape: f32[2,2,256,64], index: 3, kind: output, shape index: {1}]
  %s4 = inlined_call_operand.vmem [shape: f32[2,2,256,64], index: 4, kind: output, shape index: {2}]
  %5 = xla_tuple %s2, %s3, %s4
  %s6 = sld [smem:[#allocation0]]
  $region73: #{tpu_custom_call.1} parent=0
    _
  %s8 = ssub.s32 1, %s6
  %s9 = scalar_select 0, %s8, %s6
  $region1: #{tpu_custom_call.1} parent=0
    #allocation3 [shape = 'u8[131072]{0}', space=vmem, size = 0x20000, scoped, tag = 'input window, operand 0']
    #allocation4 [shape = 's32[2]{0}', space=sflag, size = 0x8, scoped, tag = 'scoped memory for tpu_custom_call.1']
    #allocation5 [shape = 's32[2]{0}', space=sflag, size = 0x8, scoped, tag = 'scoped memory for tpu_custom_call.1']
    #allocation6 [shape = 'u8[262144]{0}', space=vmem, size = 0x40000, scoped, tag = 'input window, operand 1']
    #allocation7 [shape = 's32[2]{0}', space=sflag, size = 0x8, scoped, tag = 'scoped memory for tpu_custom_call.1']
    #allocation8 [shape = 'u8[131072]{0}', space=vmem, size = 0x20000, scoped, tag = 'output window, operand 0']
    %10 = vsyncpa [#allocation4], 0
    %s11 = scalar_lea.sflag [#allocation4], 1
    %12 = vsyncpa %s11, 0
    %13 = vsyncpa [#allocation7], 0
    %s14 = scalar_lea.sflag [#allocation7], 1
    %15 = vsyncpa %s14, 0
    %16 = vsyncpa [#allocation5], 0
    %s17 = scalar_lea.sflag [#allocation5], 1
    %18 = vsyncpa %s17, 0
    loop: start=0, step=1, limit=18
    $region2: #{tpu_custom_call.1} parent=1 // loop_pre_header
      _
    $region3: #{tpu_custom_call.1} parent=1 // loop_header
      %s20 = sphi 0, %s24
      %p21 = scmp.ge.s32.totalorder %s20, 18
      %s27 = sphi 0, %s53
      %s28 = sphi 0, %s49
      %s29 = sphi 0, %s45
      %s30 = sphi 0, %s41
      %s31 = sphi 0, %s27
      %s32 = sphi 0, %s28
      %s33 = sphi 0, %s29
      %s34 = sphi 0, %s30
      %s35 = sphi 0, %s31
      %s36 = sphi 0, %s32
      %s37 = sphi 0, %s33
      %s38 = sphi 0, %s34
      %s60 = sphi 0, %s62
      %s63 = sphi 0, %s60
      %s64 = sphi 0, %s63
      %s80 = sphi 0, %s64
      %s88 = sphi 0, %s90
      %s91 = sphi 0, %s88
      %s92 = sphi 0, %s91
      %s108 = sphi 0, %s92
      %s118 = sphi 0, %s120
      %s121 = sphi 0, %s118
      %s122 = sphi 0, %s121
      %s138 = sphi 0, %s122
      %s148 = sphi 0, %s150
      %s151 = sphi 0, %s148
      %s152 = sphi 0, %s151
      %s168 = sphi 0, %s152
      %s178 = sphi 0, %s180
      %s181 = sphi 0, %s178
      %s182 = sphi 0, %s181
      %s198 = sphi 0, %s182
    $region4: #{tpu_custom_call.1} parent=1 // loop_header_branch
      %23 = sbr.rel (%p21) target = $region8
    $region5: #{tpu_custom_call.1} parent=1 // loop_body
      %s25 = ssub.s32 %s20, 1
      %s26 = ssub.s32 %s20, 2
      %s39 = sadd.s32 1, %s30
      %p40 = scmp.ge.s32.totalorder %s39, 2
      %s41 = scalar_select %p40, 0, %s39
      %s42 = sadd.s32 1, %s29
      %s43 = scalar_select %p40, %s42, %s29
      %p44 = scmp.ge.s32.totalorder %s43, 2
      %s45 = scalar_select %p44, 0, %s43
      %s46 = sadd.s32 1, %s28
      %s47 = scalar_select %p44, %s46, %s28
      %p48 = scmp.ge.s32.totalorder %s47, 2
      %s49 = scalar_select %p48, 0, %s47
      %s50 = sadd.s32 1, %s27
      %s51 = scalar_select %p48, %s50, %s27
      %p52 = scmp.ge.s32.totalorder %s51, 2
      %s53 = scalar_select %p52, 0, %s51
      %s54 = ssub.s32 %s27, %s53
      %s55 = ssub.s32 %s28, %s49
      %s56 = sor.u32 %s54, %s55
      %s57 = ssub.s32 %s30, %s41
      %s58 = sor.u32 %s56, %s57
      %p59 = scmp.eq.s32.totalorder %s58, 0
      %s61 = sadd.s32 %s60, 1
      %s62 = scalar_select %p59, %s60, %s61
      %p65 = pneg %p59
      %p66 = scmp.eq.s32.totalorder %s20, 15
      %p67 = por %p65, %p66
      %p68 = scmp.ne.s32.totalorder %s60, %s63
      %p69 = scmp.eq.s32.totalorder %s20, 0
      %p70 = por %p68, %p69
      %p71 = scmp.ne.s32.totalorder %s60, %s63
      %p72 = scmp.eq.s32.totalorder %s25, 15
      %p73 = por %p71, %p72
      %p74 = scmp.ne.s32.totalorder %s63, %s64
      %p75 = scmp.eq.s32.totalorder %s25, 0
      %p76 = por %p74, %p75
      %p77 = scmp.ne.s32.totalorder %s63, %s64
      %p78 = scmp.eq.s32.totalorder %s26, 15
      %p79 = por %p77, %p78
      %p81 = scmp.ne.s32.totalorder %s64, %s80
      %p82 = scmp.eq.s32.totalorder %s26, 0
      %p83 = por %p81, %p82
      %s84 = ssub.s32 %s29, %s45
      %s85 = ssub.s32 %s30, %s41
      %s86 = sor.u32 %s84, %s85
      %p87 = scmp.eq.s32.totalorder %s86, 0
      %s89 = sadd.s32 %s88, 1
      %s90 = scalar_select %p87, %s88, %s89
      %p93 = pneg %p87
      %p94 = scmp.eq.s32.totalorder %s20, 15
      %p95 = por %p93, %p94
      %p96 = scmp.ne.s32.totalorder %s88, %s91
      %p97 = scmp.eq.s32.totalorder %s20, 0
      %p98 = por %p96, %p97
      %p99 = scmp.ne.s32.totalorder %s88, %s91
      %p100 = scmp.eq.s32.totalorder %s25, 15
      %p101 = por %p99, %p100
      %p102 = scmp.ne.s32.totalorder %s91, %s92
      %p103 = scmp.eq.s32.totalorder %s25, 0
      %p104 = por %p102, %p103
      %p105 = scmp.ne.s32.totalorder %s91, %s92
      %p106 = scmp.eq.s32.totalorder %s26, 15
      %p107 = por %p105, %p106
      %p109 = scmp.ne.s32.totalorder %s92, %s108
      %p110 = scmp.eq.s32.totalorder %s26, 0
      %p111 = por %p109, %p110
      %s112 = ssub.s32 %s27, %s53
      %s113 = ssub.s32 %s28, %s49
      %s114 = sor.u32 %s112, %s113
      %s115 = ssub.s32 %s29, %s45
      %s116 = sor.u32 %s114, %s115
      %p117 = scmp.eq.s32.totalorder %s116, 0
      %s119 = sadd.s32 %s118, 1
      %s120 = scalar_select %p117, %s118, %s119
      %p123 = pneg %p117
      %p124 = scmp.eq.s32.totalorder %s20, 15
      %p125 = por %p123, %p124
      %p126 = scmp.ne.s32.totalorder %s118, %s121
      %p127 = scmp.eq.s32.totalorder %s20, 0
      %p128 = por %p126, %p127
      %p129 = scmp.ne.s32.totalorder %s118, %s121
      %p130 = scmp.eq.s32.totalorder %s25, 15
      %p131 = por %p129, %p130
      %p132 = scmp.ne.s32.totalorder %s121, %s122
      %p133 = scmp.eq.s32.totalorder %s25, 0
      %p134 = por %p132, %p133
      %p135 = scmp.ne.s32.totalorder %s121, %s122
      %p136 = scmp.eq.s32.totalorder %s26, 15
      %p137 = por %p135, %p136
      %p139 = scmp.ne.s32.totalorder %s122, %s138
      %p140 = scmp.eq.s32.totalorder %s26, 0
      %p141 = por %p139, %p140
      %s142 = ssub.s32 %s27, %s53
      %s143 = ssub.s32 %s29, %s45
      %s144 = sor.u32 %s142, %s143
      %s145 = ssub.s32 %s28, %s49
      %s146 = sor.u32 %s144, %s145
      %p147 = scmp.eq.s32.totalorder %s146, 0
      %s149 = sadd.s32 %s148, 1
      %s150 = scalar_select %p147, %s148, %s149
      %p153 = pneg %p147
      %p154 = scmp.eq.s32.totalorder %s20, 15
      %p155 = por %p153, %p154
      %p156 = scmp.ne.s32.totalorder %s148, %s151
      %p157 = scmp.eq.s32.totalorder %s20, 0
      %p158 = por %p156, %p157
      %p159 = scmp.ne.s32.totalorder %s148, %s151
      %p160 = scmp.eq.s32.totalorder %s25, 15
      %p161 = por %p159, %p160
      %p162 = scmp.ne.s32.totalorder %s151, %s152
      %p163 = scmp.eq.s32.totalorder %s25, 0
      %p164 = por %p162, %p163
      %p165 = scmp.ne.s32.totalorder %s151, %s152
      %p166 = scmp.eq.s32.totalorder %s26, 15
      %p167 = por %p165, %p166
      %p169 = scmp.ne.s32.totalorder %s152, %s168
      %p170 = scmp.eq.s32.totalorder %s26, 0
      %p171 = por %p169, %p170
      %s172 = ssub.s32 %s27, %s53
      %s173 = ssub.s32 %s29, %s45
      %s174 = sor.u32 %s172, %s173
      %s175 = ssub.s32 %s28, %s49
      %s176 = sor.u32 %s174, %s175
      %p177 = scmp.eq.s32.totalorder %s176, 0
      %s179 = sadd.s32 %s178, 1
      %s180 = scalar_select %p177, %s178, %s179
      %p183 = pneg %p177
      %p184 = scmp.eq.s32.totalorder %s20, 15
      %p185 = por %p183, %p184
      %p186 = scmp.ne.s32.totalorder %s178, %s181
      %p187 = scmp.eq.s32.totalorder %s20, 0
      %p188 = por %p186, %p187
      %p189 = scmp.ne.s32.totalorder %s178, %s181
      %p190 = scmp.eq.s32.totalorder %s25, 15
      %p191 = por %p189, %p190
      %p192 = scmp.ne.s32.totalorder %s181, %s182
      %p193 = scmp.eq.s32.totalorder %s25, 0
      %p194 = por %p192, %p193
      %p195 = scmp.ne.s32.totalorder %s181, %s182
      %p196 = scmp.eq.s32.totalorder %s26, 15
      %p197 = por %p195, %p196
      %p199 = scmp.ne.s32.totalorder %s182, %s198
      %p200 = scmp.eq.s32.totalorder %s26, 0
      %p201 = por %p199, %p200
      %p202 = scmp.le.s32.totalorder 1, %s20
      %p203 = scmp.lt.s32.totalorder %s20, 17
      %p204 = pnand %p202, %p203
      %p205 = pneg %p204
      // Predicated region
      $region9: #{tpu_custom_call.1} parent=5 // pred_check
        _
      $region10: #{tpu_custom_call.1} parent=5 // pred_check_branch
        %207 = sbr.rel (%p204) target = $region12
      $region11: #{tpu_custom_call.1} parent=5 // pred_region
        %s208 = ssub.s32 %s20, 1
      $region12: #{tpu_custom_call.1} parent=5 // pred_fallthru
        _
      %p209 = scmp.lt.s32.totalorder %s20, 16
      // Predicated region
      $region13: #{tpu_custom_call.1} parent=5 // pred_check
        %p210 = pneg %p209
      $region14: #{tpu_custom_call.1} parent=5 // pred_check_branch
        %212 = sbr.rel (%p210) target = $region16
      $region15: #{tpu_custom_call.1} parent=5 // pred_region
        // Predicated region
        $region17: #{tpu_custom_call.1} parent=15 // pred_check
          %p213 = pneg %p70
        $region18: #{tpu_custom_call.1} parent=15 // pred_check_branch
          %215 = sbr.rel (%p213) target = $region20
        $region19: #{tpu_custom_call.1} parent=15 // pred_region
          %s216 = sand.u32 %s60, 1
          %s217 = scalar_lea.sflag [#allocation4], %s216
          %s218 = sand.u32 %s60, 1
          %s219 = smul.addr %s218, 128
          %s220 = scalar_lea.vmem [#allocation3], %s219
          %s221 = smul.u32 16, %s28
          %s223 = ssub.s32 2048, 2048
          %224 = vsyncadd %s217, %s223
          %s225 = smul.addr %s221, 2
          %s226 = sadd.s32 %s30, %s225
          %s227 = smul.addr %s27, 64
          %s228 = sadd.s32 %s226, %s227
          %s229 = smul.addr %s228, 128
          %s230 = scalar_lea.hbm %s0, %s229
          %s231 = sshll.u32 %s220, 4
          %s232 = int_to_ptr.vmem [resolvable:$true] %s231
          %237 = dma.hbm_to_vmem [thread:$0]  %s230, 2048, %s232, %s217, 256, 128, 8
        $region20: #{tpu_custom_call.1} parent=15 // pred_fallthru
          _
        // Predicated region
        $region21: #{tpu_custom_call.1} parent=15 // pred_check
          %p238 = pneg %p98
        $region22: #{tpu_custom_call.1} parent=15 // pred_check_branch
          %240 = sbr.rel (%p238) target = $region24
        $region23: #{tpu_custom_call.1} parent=15 // pred_region
          %s241 = sand.u32 %s88, 1
          %s242 = scalar_lea.sflag [#allocation7], %s241
          %s243 = sand.u32 %s88, 1
          %s244 = smul.addr %s243, 256
          %s245 = scalar_lea.vmem [#allocation6], %s244
          %s246 = smul.u32 16, %s30
          %s248 = ssub.s32 4096, 4096
          %249 = vsyncadd %s242, %s248
          %s250 = smul.addr %s246, 2
          %s251 = smul.addr %s29, 64
          %s252 = sadd.s32 %s250, %s251
          %s253 = smul.addr %s252, 128
          %s254 = scalar_lea.hbm %s1, %s253
          %s255 = sshll.u32 %s245, 4
          %s256 = int_to_ptr.vmem [resolvable:$true] %s255
          %261 = dma.hbm_to_vmem [thread:$0]  %s254, 4096, %s256, %s242, 256, 256, 16
        $region24: #{tpu_custom_call.1} parent=15 // pred_fallthru
          _
      $region16: #{tpu_custom_call.1} parent=5 // pred_fallthru
        _
      %p262 = scmp.le.s32.totalorder 1, %s20
      %p263 = scmp.lt.s32.totalorder %s20, 17
      %p264 = pnand %p262, %p263
      %p265 = pneg %p264
      // Predicated region
      $region25: #{tpu_custom_call.1} parent=5 // pred_check
        _
      $region26: #{tpu_custom_call.1} parent=5 // pred_check_branch
        %267 = sbr.rel (%p264) target = $region28
      $region27: #{tpu_custom_call.1} parent=5 // pred_region
        %s268 = ssub.s32 %s20, 1
        %s269 = sand.u32 %s63, 1
        %s270 = scalar_lea.sflag [#allocation4], %s269
        %s271 = sand.u32 %s63, 1
        %s272 = smul.addr %s271, 128
        %s273 = scalar_lea.vmem [#allocation3], %s272
        // Predicated region
        $region29: #{tpu_custom_call.1} parent=27 // pred_check
          %p274 = pneg %p76
        $region30: #{tpu_custom_call.1} parent=27 // pred_check_branch
          %276 = sbr.rel (%p274) target = $region32
        $region31: #{tpu_custom_call.1} parent=27 // pred_region
          %277 = dma.done %s270, 2048
        $region32: #{tpu_custom_call.1} parent=27 // pred_fallthru
          _
        %s278 = sand.u32 %s91, 1
        %s279 = scalar_lea.sflag [#allocation7], %s278
        %s280 = sand.u32 %s91, 1
        %s281 = smul.addr %s280, 256
        %s282 = scalar_lea.vmem [#allocation6], %s281
        // Predicated region
        $region33: #{tpu_custom_call.1} parent=27 // pred_check
          %p283 = pneg %p104
        $region34: #{tpu_custom_call.1} parent=27 // pred_check_branch
          %285 = sbr.rel (%p283) target = $region36
        $region35: #{tpu_custom_call.1} parent=27 // pred_region
          %286 = dma.done %s279, 4096
        $region36: #{tpu_custom_call.1} parent=27 // pred_fallthru
          _
        %s287 = sand.u32 %s63, 1
        %s288 = scalar_lea.sflag [#allocation4], %s287
        %s289 = sand.u32 %s63, 1
        %s290 = smul.addr %s289, 128
        %s291 = scalar_lea.vmem [#allocation3], %s290
        %p292 = pneg %p76
        %p293 = pneg %p73
        %s294 = sand.u32 %s91, 1
        %s295 = scalar_lea.sflag [#allocation7], %s294
        %s296 = sand.u32 %s91, 1
        %s297 = smul.addr %s296, 256
        %s298 = scalar_lea.vmem [#allocation6], %s297
        %p299 = pneg %p104
        %p300 = pneg %p101
        %p301 = pneg %p134
        %p302 = pneg %p131
        %s303 = sand.u32 %s121, 1
        %s304 = scalar_lea.sflag [#allocation5], %s303
        %s305 = sand.u32 %s121, 1
        %s306 = smul.addr %s305, 128
        %s307 = scalar_lea.vmem [#allocation8], %s306
        %p308 = pneg %p164
        %p309 = pneg %p161
        %s310 = smul.u32 16, %s32
        %p311 = scmp.lt.s32.totalorder %s31, 1
        %s312 = scalar_select %p311, %s31, 1
        %p313 = scmp.lt.s32.totalorder %s33, 1
        %s314 = scalar_select %p313, %s33, 1
        %p315 = scmp.lt.s32.totalorder %s310, 31
        %s316 = scalar_select %p315, %s310, 31
        %s317 = smul.addr %s314, 32
        %s318 = sadd.s32 %s316, %s317
        %s319 = smul.addr %s312, 64
        %s320 = sadd.s32 %s318, %s319
        %s321 = smul.addr %s320, 8
        %s322 = scalar_lea.vmem %s3, %s321
        %p323 = pneg %p194
        %p324 = pneg %p191
        %s325 = smul.u32 16, %s32
        %p326 = scmp.lt.s32.totalorder %s31, 1
        %s327 = scalar_select %p326, %s31, 1
        %p328 = scmp.lt.s32.totalorder %s33, 1
        %s329 = scalar_select %p328, %s33, 1
        %p330 = scmp.lt.s32.totalorder %s325, 31
        %s331 = scalar_select %p330, %s325, 31
        %s332 = smul.addr %s329, 32
        %s333 = sadd.s32 %s331, %s332
        %s334 = smul.addr %s327, 64
        %s335 = sadd.s32 %s333, %s334
        %s336 = smul.addr %s335, 8
        %s337 = scalar_lea.vmem %s4, %s336
        %s338 = smul.u32 16, %s32
        %s339 = smul.u32 16, %s34
        %s340 = smul.u32 16, %s32
        %s341 = smul.u32 16, %s32
        %p342 = scmp.lt.s32.totalorder %s31, 1
        %s343 = scalar_select %p342, %s31, 1
        %p344 = scmp.lt.s32.totalorder %s33, 1
        %s345 = scalar_select %p344, %s33, 1
        %p346 = scmp.lt.s32.totalorder %s341, 31
        %s347 = scalar_select %p346, %s341, 31
        %s348 = smul.addr %s345, 32
        %s349 = sadd.s32 %s347, %s348
        %s350 = smul.addr %s343, 64
        %s351 = sadd.s32 %s349, %s350
        %s352 = smul.addr %s351, 8
        %s353 = scalar_lea.vmem %s3, %s352
        %s354 = smul.u32 16, %s32
        %s355 = smul.u32 16, %s32
        %p356 = scmp.lt.s32.totalorder %s31, 1
        %s357 = scalar_select %p356, %s31, 1
        %p358 = scmp.lt.s32.totalorder %s33, 1
        %s359 = scalar_select %p358, %s33, 1
        %p360 = scmp.lt.s32.totalorder %s355, 31
        %s361 = scalar_select %p360, %s355, 31
        %s362 = smul.addr %s359, 32
        %s363 = sadd.s32 %s361, %s362
        %s364 = smul.addr %s357, 64
        %s365 = sadd.s32 %s363, %s364
        %s366 = smul.addr %s365, 8
        %s367 = scalar_lea.vmem %s4, %s366
        %s368 = smul.u32 16, %s32
        %p369 = scmp.eq.s32.totalorder %s34, 0
        // Predicated region
        $region37: #{tpu_custom_call.1} parent=27 // pred_check
          %p370 = pneg %p369
        $region38: #{tpu_custom_call.1} parent=27 // pred_check_branch
          %372 = sbr.rel (%p370) target = $region40
        $region39: #{tpu_custom_call.1} parent=27 // pred_region
          %373 = vst [vmem:[#allocation2] sm:$0xff] 0.0
          %374 = vst [vmem:[#allocation2 + $0x8] sm:$0xff] 0.0
          %375 = vst [vmem:[#allocation2 + $0x10] sm:$0xff] 0.0
          %376 = vst [vmem:[#allocation2 + $0x18] sm:$0xff] 0.0
          %377 = vst [vmem:[#allocation2 + $0x20] sm:$0xff] 0.0
          %378 = vst [vmem:[#allocation2 + $0x28] sm:$0xff] 0.0
          %379 = vst [vmem:[#allocation2 + $0x30] sm:$0xff] 0.0
          %380 = vst [vmem:[#allocation2 + $0x38] sm:$0xff] 0.0
          %381 = vst [vmem:[#allocation2 + $0x40] sm:$0xff] 0.0
          %382 = vst [vmem:[#allocation2 + $0x48] sm:$0xff] 0.0
          %383 = vst [vmem:[#allocation2 + $0x50] sm:$0xff] 0.0
          %384 = vst [vmem:[#allocation2 + $0x58] sm:$0xff] 0.0
          %385 = vst [vmem:[#allocation2 + $0x60] sm:$0xff] 0.0
          %386 = vst [vmem:[#allocation2 + $0x68] sm:$0xff] 0.0
          %387 = vst [vmem:[#allocation2 + $0x70] sm:$0xff] 0.0
          %388 = vst [vmem:[#allocation2 + $0x78] sm:$0xff] 0.0
          %389 = vst [vmem:[#allocation2 + $0x80] sm:$0xff] 0.0
          %390 = vst [vmem:[#allocation2 + $0x88] sm:$0xff] 0.0
          %391 = vst [vmem:[#allocation2 + $0x90] sm:$0xff] 0.0
          %392 = vst [vmem:[#allocation2 + $0x98] sm:$0xff] 0.0
          %393 = vst [vmem:[#allocation2 + $0xa0] sm:$0xff] 0.0
          %394 = vst [vmem:[#allocation2 + $0xa8] sm:$0xff] 0.0
          %395 = vst [vmem:[#allocation2 + $0xb0] sm:$0xff] 0.0
          %396 = vst [vmem:[#allocation2 + $0xb8] sm:$0xff] 0.0
          %397 = vst [vmem:[#allocation2 + $0xc0] sm:$0xff] 0.0
          %398 = vst [vmem:[#allocation2 + $0xc8] sm:$0xff] 0.0
          %399 = vst [vmem:[#allocation2 + $0xd0] sm:$0xff] 0.0
          %400 = vst [vmem:[#allocation2 + $0xd8] sm:$0xff] 0.0
          %401 = vst [vmem:[#allocation2 + $0xe0] sm:$0xff] 0.0
          %402 = vst [vmem:[#allocation2 + $0xe8] sm:$0xff] 0.0
          %403 = vst [vmem:[#allocation2 + $0xf0] sm:$0xff] 0.0
          %404 = vst [vmem:[#allocation2 + $0xf8] sm:$0xff] 0.0
        $region40: #{tpu_custom_call.1} parent=27 // pred_fallthru
          _
        %v405 = vld [vmem:[#allocation2] sm:$0xff]
        %v406 = vld [vmem:[#allocation2 + $0x8] sm:$0xff]
        %v407 = vld [vmem:[#allocation2 + $0x10] sm:$0xff]
        %v408 = vld [vmem:[#allocation2 + $0x18] sm:$0xff]
        %v409 = vld [vmem:[#allocation2 + $0x20] sm:$0xff]
        %v410 = vld [vmem:[#allocation2 + $0x28] sm:$0xff]
        %v411 = vld [vmem:[#allocation2 + $0x30] sm:$0xff]
        %v412 = vld [vmem:[#allocation2 + $0x38] sm:$0xff]
        %v413 = vld [vmem:[#allocation2 + $0x40] sm:$0xff]
        %v414 = vld [vmem:[#allocation2 + $0x48] sm:$0xff]
        %v415 = vld [vmem:[#allocation2 + $0x50] sm:$0xff]
        %v416 = vld [vmem:[#allocation2 + $0x58] sm:$0xff]
        %v417 = vld [vmem:[#allocation2 + $0x60] sm:$0xff]
        %v418 = vld [vmem:[#allocation2 + $0x68] sm:$0xff]
        %v419 = vld [vmem:[#allocation2 + $0x70] sm:$0xff]
        %v420 = vld [vmem:[#allocation2 + $0x78] sm:$0xff]
        %v421 = vld [vmem:[#allocation2 + $0x80] sm:$0xff]
        %v422 = vld [vmem:[#allocation2 + $0x88] sm:$0xff]
        %v423 = vld [vmem:[#allocation2 + $0x90] sm:$0xff]
        %v424 = vld [vmem:[#allocation2 + $0x98] sm:$0xff]
        %v425 = vld [vmem:[#allocation2 + $0xa0] sm:$0xff]
        %v426 = vld [vmem:[#allocation2 + $0xa8] sm:$0xff]
        %v427 = vld [vmem:[#allocation2 + $0xb0] sm:$0xff]
        %v428 = vld [vmem:[#allocation2 + $0xb8] sm:$0xff]
        %v429 = vld [vmem:[#allocation2 + $0xc0] sm:$0xff]
        %v430 = vld [vmem:[#allocation2 + $0xc8] sm:$0xff]
        %v431 = vld [vmem:[#allocation2 + $0xd0] sm:$0xff]
        %v432 = vld [vmem:[#allocation2 + $0xd8] sm:$0xff]
        %v433 = vld [vmem:[#allocation2 + $0xe0] sm:$0xff]
        %v434 = vld [vmem:[#allocation2 + $0xe8] sm:$0xff]
        %v435 = vld [vmem:[#allocation2 + $0xf0] sm:$0xff]
        %v436 = vld [vmem:[#allocation2 + $0xf8] sm:$0xff]
        %v437 = vld [vmem:[%s273] sm:$0xff]
        %v438 = vld [vmem:[%s273 + $0x8] sm:$0xff]
        %v439 = vld [vmem:[%s273 + $0x10] sm:$0xff]
        %v440 = vld [vmem:[%s273 + $0x18] sm:$0xff]
        %v441 = vld [vmem:[%s273 + $0x20] sm:$0xff]
        %v442 = vld [vmem:[%s273 + $0x28] sm:$0xff]
        %v443 = vld [vmem:[%s273 + $0x30] sm:$0xff]
        %v444 = vld [vmem:[%s273 + $0x38] sm:$0xff]
        %v445 = vld [vmem:[%s273 + $0x40] sm:$0xff]
        %v446 = vld [vmem:[%s273 + $0x48] sm:$0xff]
        %v447 = vld [vmem:[%s273 + $0x50] sm:$0xff]
        %v448 = vld [vmem:[%s273 + $0x58] sm:$0xff]
        %v449 = vld [vmem:[%s273 + $0x60] sm:$0xff]
        %v450 = vld [vmem:[%s273 + $0x68] sm:$0xff]
        %v451 = vld [vmem:[%s273 + $0x70] sm:$0xff]
        %v452 = vld [vmem:[%s273 + $0x78] sm:$0xff]
        %v453 = vld [vmem:[%s282] sm:$0xff]
        %v454 = vld [vmem:[%s282 + $0x8] sm:$0xff]
        %v455 = vld [vmem:[%s282 + $0x10] sm:$0xff]
        %v456 = vld [vmem:[%s282 + $0x18] sm:$0xff]
        %v457 = vld [vmem:[%s282 + $0x20] sm:$0xff]
        %v458 = vld [vmem:[%s282 + $0x28] sm:$0xff]
        %v459 = vld [vmem:[%s282 + $0x30] sm:$0xff]
        %v460 = vld [vmem:[%s282 + $0x38] sm:$0xff]
        %v461 = vld [vmem:[%s282 + $0x40] sm:$0xff]
        %v462 = vld [vmem:[%s282 + $0x48] sm:$0xff]
        %v463 = vld [vmem:[%s282 + $0x50] sm:$0xff]
        %v464 = vld [vmem:[%s282 + $0x58] sm:$0xff]
        %v465 = vld [vmem:[%s282 + $0x60] sm:$0xff]
        %v466 = vld [vmem:[%s282 + $0x68] sm:$0xff]
        %v467 = vld [vmem:[%s282 + $0x70] sm:$0xff]
        %v468 = vld [vmem:[%s282 + $0x78] sm:$0xff]
        %v469 = vld [vmem:[%s282 + $0x80] sm:$0xff]
        %v470 = vld [vmem:[%s282 + $0x88] sm:$0xff]
        %v471 = vld [vmem:[%s282 + $0x90] sm:$0xff]
        %v472 = vld [vmem:[%s282 + $0x98] sm:$0xff]
        %v473 = vld [vmem:[%s282 + $0xa0] sm:$0xff]
        %v474 = vld [vmem:[%s282 + $0xa8] sm:$0xff]
        %v475 = vld [vmem:[%s282 + $0xb0] sm:$0xff]
        %v476 = vld [vmem:[%s282 + $0xb8] sm:$0xff]
        %v477 = vld [vmem:[%s282 + $0xc0] sm:$0xff]
        %v478 = vld [vmem:[%s282 + $0xc8] sm:$0xff]
        %v479 = vld [vmem:[%s282 + $0xd0] sm:$0xff]
        %v480 = vld [vmem:[%s282 + $0xd8] sm:$0xff]
        %v481 = vld [vmem:[%s282 + $0xe0] sm:$0xff]
        %v482 = vld [vmem:[%s282 + $0xe8] sm:$0xff]
        %v483 = vld [vmem:[%s282 + $0xf0] sm:$0xff]
        %v484 = vld [vmem:[%s282 + $0xf8] sm:$0xff]
        %485 = vmatprep.subr.mxu0 %v484
        %486 = vmatpush1.msra.mxu0 %v483
        %487 = vmatprep.subr.mxu0 %v482
        %488 = vmatpush1.msra.mxu0 %v481
        %489 = vmatprep.subr.mxu0 %v480
        %490 = vmatpush1.msra.mxu0 %v479
        %491 = vmatprep.subr.mxu0 %v478
        %492 = vmatpush1.msra.mxu0 %v477
        %493 = vmatprep.subr.mxu0 %v476
        %494 = vmatpush1.msra.mxu0 %v475
        %495 = vmatprep.subr.mxu0 %v474
        %496 = vmatpush1.msra.mxu0 %v473
        %497 = vmatprep.subr.mxu0 %v472
        %498 = vmatpush1.msra.mxu0 %v471
        %499 = vmatprep.subr.mxu0 %v470
        %500 = vmatpush1.msra.mxu0 %v469
        %501 = vmatprep.subr.mxu0 %v468
        %502 = vmatpush1.msra.mxu0 %v467
        %503 = vmatprep.subr.mxu0 %v466
        %504 = vmatpush1.msra.mxu0 %v465
        %505 = vmatprep.subr.mxu0 %v464
        %506 = vmatpush1.msra.mxu0 %v463
        %507 = vmatprep.subr.mxu0 %v462
        %508 = vmatpush1.msra.mxu0 %v461
        %509 = vmatprep.subr.mxu0 %v460
        %510 = vmatpush1.msra.mxu0 %v459
        %511 = vmatprep.subr.mxu0 %v458
        %512 = vmatpush1.msra.mxu0 %v457
        %513 = vmatprep.subr.mxu0 %v456
        %514 = vmatpush1.msra.mxu0 %v455
        %515 = vmatprep.subr.mxu0 %v454
        %516 = vmatpush1.msra.mxu0 %v453
        %517 = vmatprep.subr.mxu0 0.0
        %518 = vmatpush2.msra.mxu0 0.0
        %519 = vmatprep.subr.mxu0 0.0
        %520 = vmatpush2.msra.mxu0 0.0
        %521 = vmatprep.subr.mxu0 0.0
        %522 = vmatpush2.msra.mxu0 0.0
        %523 = vmatprep.subr.mxu0 0.0
        %524 = vmatpush2.msra.mxu0 0.0
        %525 = vmatprep.subr.mxu0 0.0
        %526 = vmatpush2.msra.mxu0 0.0
        %527 = vmatprep.subr.mxu0 0.0
        %528 = vmatpush2.msra.mxu0 0.0
        %529 = vmatprep.subr.mxu0 0.0
        %530 = vmatpush2.msra.mxu0 0.0
        %531 = vmatprep.subr.mxu0 0.0
        %532 = vmatpush2.msra.mxu0 0.0
        %533 = vmatprep.subr.mxu0 0.0
        %534 = vmatpush2.msra.mxu0 0.0
        %535 = vmatprep.subr.mxu0 0.0
        %536 = vmatpush2.msra.mxu0 0.0
        %537 = vmatprep.subr.mxu0 0.0
        %538 = vmatpush2.msra.mxu0 0.0
        %539 = vmatprep.subr.mxu0 0.0
        %540 = vmatpush2.msra.mxu0 0.0
        %541 = vmatprep.subr.mxu0 0.0
        %542 = vmatpush2.msra.mxu0 0.0
        %543 = vmatprep.subr.mxu0 0.0
        %544 = vmatpush2.msra.mxu0 0.0
        %545 = vmatprep.subr.mxu0 0.0
        %546 = vmatpush2.msra.mxu0 0.0
        %547 = vmatprep.subr.mxu0 0.0
        %548 = vmatpush2.msra.mxu0 0.0
        %549 = vmatprep.mubr.f32.mxu0 0.0
        %550 = vmatmul.mubr.f32.gmra.mxu0 %v437
        %v551 = vpop.f32.mrf.mxu0
        %v552 = vadd.f32 0.0, %v551
        %v553 = vpop.f32.mrf.mxu0
        %v554 = vadd.f32 0.0, %v553
        %555 = vmatprep.mubr.f32.mxu0 0.0
        %556 = vmatmul.mubr.f32.gmra.mxu0 %v438
        %v557 = vpop.f32.mrf.mxu0
        %v558 = vadd.f32 0.0, %v557
        %v559 = vpop.f32.mrf.mxu0
        %v560 = vadd.f32 0.0, %v559
        %561 = vmatprep.mubr.f32.mxu0 0.0
        %562 = vmatmul.mubr.f32.gmra.mxu0 %v439
        %v563 = vpop.f32.mrf.mxu0
        %v564 = vadd.f32 0.0, %v563
        %v565 = vpop.f32.mrf.mxu0
        %v566 = vadd.f32 0.0, %v565
        %567 = vmatprep.mubr.f32.mxu0 0.0
        %568 = vmatmul.mubr.f32.gmra.mxu0 %v440
        %v569 = vpop.f32.mrf.mxu0
        %v570 = vadd.f32 0.0, %v569
        %v571 = vpop.f32.mrf.mxu0
        %v572 = vadd.f32 0.0, %v571
        %573 = vmatprep.mubr.f32.mxu0 0.0
        %574 = vmatmul.mubr.f32.gmra.mxu0 %v441
        %v575 = vpop.f32.mrf.mxu0
        %v576 = vadd.f32 0.0, %v575
        %v577 = vpop.f32.mrf.mxu0
        %v578 = vadd.f32 0.0, %v577
        %579 = vmatprep.mubr.f32.mxu0 0.0
        %580 = vmatmul.mubr.f32.gmra.mxu0 %v442
        %v581 = vpop.f32.mrf.mxu0
        %v582 = vadd.f32 0.0, %v581
        %v583 = vpop.f32.mrf.mxu0
        %v584 = vadd.f32 0.0, %v583
        %585 = vmatprep.mubr.f32.mxu0 0.0
        %586 = vmatmul.mubr.f32.gmra.mxu0 %v443
        %v587 = vpop.f32.mrf.mxu0
        %v588 = vadd.f32 0.0, %v587
        %v589 = vpop.f32.mrf.mxu0
        %v590 = vadd.f32 0.0, %v589
        %591 = vmatprep.mubr.f32.mxu0 0.0
        %592 = vmatmul.mubr.f32.gmra.mxu0 %v444
        %v593 = vpop.f32.mrf.mxu0
        %v594 = vadd.f32 0.0, %v593
        %v595 = vpop.f32.mrf.mxu0
        %v596 = vadd.f32 0.0, %v595
        %597 = vmatprep.mubr.f32.mxu0 0.0
        %598 = vmatmul.mubr.f32.gmra.mxu0 %v445
        %v599 = vpop.f32.mrf.mxu0
        %v600 = vadd.f32 0.0, %v599
        %v601 = vpop.f32.mrf.mxu0
        %v602 = vadd.f32 0.0, %v601
        %603 = vmatprep.mubr.f32.mxu0 0.0
        %604 = vmatmul.mubr.f32.gmra.mxu0 %v446
        %v605 = vpop.f32.mrf.mxu0
        %v606 = vadd.f32 0.0, %v605
        %v607 = vpop.f32.mrf.mxu0
        %v608 = vadd.f32 0.0, %v607
        %609 = vmatprep.mubr.f32.mxu0 0.0
        %610 = vmatmul.mubr.f32.gmra.mxu0 %v447
        %v611 = vpop.f32.mrf.mxu0
        %v612 = vadd.f32 0.0, %v611
        %v613 = vpop.f32.mrf.mxu0
        %v614 = vadd.f32 0.0, %v613
        %615 = vmatprep.mubr.f32.mxu0 0.0
        %616 = vmatmul.mubr.f32.gmra.mxu0 %v448
        %v617 = vpop.f32.mrf.mxu0
        %v618 = vadd.f32 0.0, %v617
        %v619 = vpop.f32.mrf.mxu0
        %v620 = vadd.f32 0.0, %v619
        %621 = vmatprep.mubr.f32.mxu0 0.0
        %622 = vmatmul.mubr.f32.gmra.mxu0 %v449
        %v623 = vpop.f32.mrf.mxu0
        %v624 = vadd.f32 0.0, %v623
        %v625 = vpop.f32.mrf.mxu0
        %v626 = vadd.f32 0.0, %v625
        %627 = vmatprep.mubr.f32.mxu0 0.0
        %628 = vmatmul.mubr.f32.gmra.mxu0 %v450
        %v629 = vpop.f32.mrf.mxu0
        %v630 = vadd.f32 0.0, %v629
        %v631 = vpop.f32.mrf.mxu0
        %v632 = vadd.f32 0.0, %v631
        %633 = vmatprep.mubr.f32.mxu0 0.0
        %634 = vmatmul.mubr.f32.gmra.mxu0 %v451
        %v635 = vpop.f32.mrf.mxu0
        %v636 = vadd.f32 0.0, %v635
        %v637 = vpop.f32.mrf.mxu0
        %v638 = vadd.f32 0.0, %v637
        %639 = vmatprep.mubr.f32.mxu0 0.0
        %640 = vmatmul.mubr.f32.gmra.mxu0 %v452
        %v641 = vpop.f32.mrf.mxu0
        %v642 = vadd.f32 0.0, %v641
        %v643 = vpop.f32.mrf.mxu0
        %v644 = vadd.f32 0.0, %v643
        %645 = vdwg.mxu0
        %v646 = vadd.f32 %v405, %v552
        %v647 = vadd.f32 %v406, %v554
        %v648 = vadd.f32 %v407, %v558
        %v649 = vadd.f32 %v408, %v560
        %v650 = vadd.f32 %v409, %v564
        %v651 = vadd.f32 %v410, %v566
        %v652 = vadd.f32 %v411, %v570
        %v653 = vadd.f32 %v412, %v572
        %v654 = vadd.f32 %v413, %v576
        %v655 = vadd.f32 %v414, %v578
        %v656 = vadd.f32 %v415, %v582
        %v657 = vadd.f32 %v416, %v584
        %v658 = vadd.f32 %v417, %v588
        %v659 = vadd.f32 %v418, %v590
        %v660 = vadd.f32 %v419, %v594
        %v661 = vadd.f32 %v420, %v596
        %v662 = vadd.f32 %v421, %v600
        %v663 = vadd.f32 %v422, %v602
        %v664 = vadd.f32 %v423, %v606
        %v665 = vadd.f32 %v424, %v608
        %v666 = vadd.f32 %v425, %v612
        %v667 = vadd.f32 %v426, %v614
        %v668 = vadd.f32 %v427, %v618
        %v669 = vadd.f32 %v428, %v620
        %v670 = vadd.f32 %v429, %v624
        %v671 = vadd.f32 %v430, %v626
        %v672 = vadd.f32 %v431, %v630
        %v673 = vadd.f32 %v432, %v632
        %v674 = vadd.f32 %v433, %v636
        %v675 = vadd.f32 %v434, %v638
        %v676 = vadd.f32 %v435, %v642
        %v677 = vadd.f32 %v436, %v644
        %678 = vst [vmem:[#allocation2] sm:$0xff] %v646
        %679 = vst [vmem:[#allocation2 + $0x8] sm:$0xff] %v647
        %680 = vst [vmem:[#allocation2 + $0x10] sm:$0xff] %v648
        %681 = vst [vmem:[#allocation2 + $0x18] sm:$0xff] %v649
        %682 = vst [vmem:[#allocation2 + $0x20] sm:$0xff] %v650
        %683 = vst [vmem:[#allocation2 + $0x28] sm:$0xff] %v651
        %684 = vst [vmem:[#allocation2 + $0x30] sm:$0xff] %v652
        %685 = vst [vmem:[#allocation2 + $0x38] sm:$0xff] %v653
        %686 = vst [vmem:[#allocation2 + $0x40] sm:$0xff] %v654
        %687 = vst [vmem:[#allocation2 + $0x48] sm:$0xff] %v655
        %688 = vst [vmem:[#allocation2 + $0x50] sm:$0xff] %v656
        %689 = vst [vmem:[#allocation2 + $0x58] sm:$0xff] %v657
        %690 = vst [vmem:[#allocation2 + $0x60] sm:$0xff] %v658
        %691 = vst [vmem:[#allocation2 + $0x68] sm:$0xff] %v659
        %692 = vst [vmem:[#allocation2 + $0x70] sm:$0xff] %v660
        %693 = vst [vmem:[#allocation2 + $0x78] sm:$0xff] %v661
        %694 = vst [vmem:[#allocation2 + $0x80] sm:$0xff] %v662
        %695 = vst [vmem:[#allocation2 + $0x88] sm:$0xff] %v663
        %696 = vst [vmem:[#allocation2 + $0x90] sm:$0xff] %v664
        %697 = vst [vmem:[#allocation2 + $0x98] sm:$0xff] %v665
        %698 = vst [vmem:[#allocation2 + $0xa0] sm:$0xff] %v666
        %699 = vst [vmem:[#allocation2 + $0xa8] sm:$0xff] %v667
        %700 = vst [vmem:[#allocation2 + $0xb0] sm:$0xff] %v668
        %701 = vst [vmem:[#allocation2 + $0xb8] sm:$0xff] %v669
        %702 = vst [vmem:[#allocation2 + $0xc0] sm:$0xff] %v670
        %703 = vst [vmem:[#allocation2 + $0xc8] sm:$0xff] %v671
        %704 = vst [vmem:[#allocation2 + $0xd0] sm:$0xff] %v672
        %705 = vst [vmem:[#allocation2 + $0xd8] sm:$0xff] %v673
        %706 = vst [vmem:[#allocation2 + $0xe0] sm:$0xff] %v674
        %707 = vst [vmem:[#allocation2 + $0xe8] sm:$0xff] %v675
        %708 = vst [vmem:[#allocation2 + $0xf0] sm:$0xff] %v676
        %709 = vst [vmem:[#allocation2 + $0xf8] sm:$0xff] %v677
        %p710 = scmp.eq.s32.totalorder %s34, 1
        // Predicated region
        $region41: #{tpu_custom_call.1} parent=27 // pred_check
          %p711 = pneg %p710
        $region42: #{tpu_custom_call.1} parent=27 // pred_check_branch
          %713 = sbr.rel (%p711) target = $region44
        $region43: #{tpu_custom_call.1} parent=27 // pred_region
          %v714 = vld [vmem:[#allocation2] sm:$0xff]
          %v715 = vld [vmem:[#allocation2 + $0x8] sm:$0xff]
          %v716 = vld [vmem:[#allocation2 + $0x10] sm:$0xff]
          %v717 = vld [vmem:[#allocation2 + $0x18] sm:$0xff]
          %v718 = vld [vmem:[#allocation2 + $0x20] sm:$0xff]
          %v719 = vld [vmem:[#allocation2 + $0x28] sm:$0xff]
          %v720 = vld [vmem:[#allocation2 + $0x30] sm:$0xff]
          %v721 = vld [vmem:[#allocation2 + $0x38] sm:$0xff]
          %v722 = vld [vmem:[#allocation2 + $0x40] sm:$0xff]
          %v723 = vld [vmem:[#allocation2 + $0x48] sm:$0xff]
          %v724 = vld [vmem:[#allocation2 + $0x50] sm:$0xff]
          %v725 = vld [vmem:[#allocation2 + $0x58] sm:$0xff]
          %v726 = vld [vmem:[#allocation2 + $0x60] sm:$0xff]
          %v727 = vld [vmem:[#allocation2 + $0x68] sm:$0xff]
          %v728 = vld [vmem:[#allocation2 + $0x70] sm:$0xff]
          %v729 = vld [vmem:[#allocation2 + $0x78] sm:$0xff]
          %v730 = vld [vmem:[#allocation2 + $0x80] sm:$0xff]
          %v731 = vld [vmem:[#allocation2 + $0x88] sm:$0xff]
          %v732 = vld [vmem:[#allocation2 + $0x90] sm:$0xff]
          %v733 = vld [vmem:[#allocation2 + $0x98] sm:$0xff]
          %v734 = vld [vmem:[#allocation2 + $0xa0] sm:$0xff]
          %v735 = vld [vmem:[#allocation2 + $0xa8] sm:$0xff]
          %v736 = vld [vmem:[#allocation2 + $0xb0] sm:$0xff]
          %v737 = vld [vmem:[#allocation2 + $0xb8] sm:$0xff]
          %v738 = vld [vmem:[#allocation2 + $0xc0] sm:$0xff]
          %v739 = vld [vmem:[#allocation2 + $0xc8] sm:$0xff]
          %v740 = vld [vmem:[#allocation2 + $0xd0] sm:$0xff]
          %v741 = vld [vmem:[#allocation2 + $0xd8] sm:$0xff]
          %v742 = vld [vmem:[#allocation2 + $0xe0] sm:$0xff]
          %v743 = vld [vmem:[#allocation2 + $0xe8] sm:$0xff]
          %v744 = vld [vmem:[#allocation2 + $0xf0] sm:$0xff]
          %v745 = vld [vmem:[#allocation2 + $0xf8] sm:$0xff]
          %746 = vst [vmem:[%s307] sm:$0xff] %v714
          %747 = vst [vmem:[%s307 + $0x8] sm:$0xff] %v716
          %748 = vst [vmem:[%s307 + $0x10] sm:$0xff] %v718
          %749 = vst [vmem:[%s307 + $0x18] sm:$0xff] %v720
          %750 = vst [vmem:[%s307 + $0x20] sm:$0xff] %v722
          %751 = vst [vmem:[%s307 + $0x28] sm:$0xff] %v724
          %752 = vst [vmem:[%s307 + $0x30] sm:$0xff] %v726
          %753 = vst [vmem:[%s307 + $0x38] sm:$0xff] %v728
          %754 = vst [vmem:[%s307 + $0x40] sm:$0xff] %v730
          %755 = vst [vmem:[%s307 + $0x48] sm:$0xff] %v732
          %756 = vst [vmem:[%s307 + $0x50] sm:$0xff] %v734
          %757 = vst [vmem:[%s307 + $0x58] sm:$0xff] %v736
          %758 = vst [vmem:[%s307 + $0x60] sm:$0xff] %v738
          %759 = vst [vmem:[%s307 + $0x68] sm:$0xff] %v740
          %760 = vst [vmem:[%s307 + $0x70] sm:$0xff] %v742
          %761 = vst [vmem:[%s307 + $0x78] sm:$0xff] %v744
          %vm762 = vcmask 523264
          %763 = vst.msk [vmem:[%s353] sm:$0xff] %vm762, %v715
          %764 = vst.msk [vmem:[%s353 + $0x8] sm:$0xff] %vm762, %v717
          %765 = vst.msk [vmem:[%s353 + $0x10] sm:$0xff] %vm762, %v719
          %766 = vst.msk [vmem:[%s353 + $0x18] sm:$0xff] %vm762, %v721
          %767 = vst.msk [vmem:[%s353 + $0x20] sm:$0xff] %vm762, %v723
          %768 = vst.msk [vmem:[%s353 + $0x28] sm:$0xff] %vm762, %v725
          %769 = vst.msk [vmem:[%s353 + $0x30] sm:$0xff] %vm762, %v727
          %770 = vst.msk [vmem:[%s353 + $0x38] sm:$0xff] %vm762, %v729
          %771 = vst.msk [vmem:[%s353 + $0x40] sm:$0xff] %vm762, %v731
          %772 = vst.msk [vmem:[%s353 + $0x48] sm:$0xff] %vm762, %v733
          %773 = vst.msk [vmem:[%s353 + $0x50] sm:$0xff] %vm762, %v735
          %774 = vst.msk [vmem:[%s353 + $0x58] sm:$0xff] %vm762, %v737
          %775 = vst.msk [vmem:[%s353 + $0x60] sm:$0xff] %vm762, %v739
          %776 = vst.msk [vmem:[%s353 + $0x68] sm:$0xff] %vm762, %v741
          %777 = vst.msk [vmem:[%s353 + $0x70] sm:$0xff] %vm762, %v743
          %778 = vst.msk [vmem:[%s353 + $0x78] sm:$0xff] %vm762, %v745
          %795 = vrot.lane.b32.xlu0 %v715, 64
          %v796 = vpop.permute.xlu0 %795
          %797 = vrot.lane.b32.xlu0 %v717, 64
          %v798 = vpop.permute.xlu0 %797
          %799 = vrot.lane.b32.xlu0 %v719, 64
          %v800 = vpop.permute.xlu0 %799
          %801 = vrot.lane.b32.xlu0 %v721, 64
          %v802 = vpop.permute.xlu0 %801
          %803 = vrot.lane.b32.xlu0 %v723, 64
          %v804 = vpop.permute.xlu0 %803
          %805 = vrot.lane.b32.xlu0 %v725, 64
          %v806 = vpop.permute.xlu0 %805
          %807 = vrot.lane.b32.xlu0 %v727, 64
          %v808 = vpop.permute.xlu0 %807
          %809 = vrot.lane.b32.xlu0 %v729, 64
          %v810 = vpop.permute.xlu0 %809
          %811 = vrot.lane.b32.xlu0 %v731, 64
          %v812 = vpop.permute.xlu0 %811
          %813 = vrot.lane.b32.xlu0 %v733, 64
          %v814 = vpop.permute.xlu0 %813
          %815 = vrot.lane.b32.xlu0 %v735, 64
          %v816 = vpop.permute.xlu0 %815
          %817 = vrot.lane.b32.xlu0 %v737, 64
          %v818 = vpop.permute.xlu0 %817
          %819 = vrot.lane.b32.xlu0 %v739, 64
          %v820 = vpop.permute.xlu0 %819
          %821 = vrot.lane.b32.xlu0 %v741, 64
          %v822 = vpop.permute.xlu0 %821
          %823 = vrot.lane.b32.xlu0 %v743, 64
          %v824 = vpop.permute.xlu0 %823
          %825 = vrot.lane.b32.xlu0 %v745, 64
          %v826 = vpop.permute.xlu0 %825
          %843 = vst.msk [vmem:[%s367] sm:$0xff] %vm762, %v796
          %844 = vst.msk [vmem:[%s367 + $0x8] sm:$0xff] %vm762, %v798
          %845 = vst.msk [vmem:[%s367 + $0x10] sm:$0xff] %vm762, %v800
          %846 = vst.msk [vmem:[%s367 + $0x18] sm:$0xff] %vm762, %v802
          %847 = vst.msk [vmem:[%s367 + $0x20] sm:$0xff] %vm762, %v804
          %848 = vst.msk [vmem:[%s367 + $0x28] sm:$0xff] %vm762, %v806
          %849 = vst.msk [vmem:[%s367 + $0x30] sm:$0xff] %vm762, %v808
          %850 = vst.msk [vmem:[%s367 + $0x38] sm:$0xff] %vm762, %v810
          %851 = vst.msk [vmem:[%s367 + $0x40] sm:$0xff] %vm762, %v812
          %852 = vst.msk [vmem:[%s367 + $0x48] sm:$0xff] %vm762, %v814
          %853 = vst.msk [vmem:[%s367 + $0x50] sm:$0xff] %vm762, %v816
          %854 = vst.msk [vmem:[%s367 + $0x58] sm:$0xff] %vm762, %v818
          %855 = vst.msk [vmem:[%s367 + $0x60] sm:$0xff] %vm762, %v820
          %856 = vst.msk [vmem:[%s367 + $0x68] sm:$0xff] %vm762, %v822
          %857 = vst.msk [vmem:[%s367 + $0x70] sm:$0xff] %vm762, %v824
          %858 = vst.msk [vmem:[%s367 + $0x78] sm:$0xff] %vm762, %v826
        $region44: #{tpu_custom_call.1} parent=27 // pred_fallthru
          _
        %s859 = sand.u32 %s121, 1
        %s860 = scalar_lea.sflag [#allocation5], %s859
        %s861 = sand.u32 %s121, 1
        %s862 = smul.addr %s861, 128
        %s863 = scalar_lea.vmem [#allocation8], %s862
        %s864 = smul.u32 16, %s32
        %p865 = scmp.lt.s32.totalorder %s31, 1
        %s866 = scalar_select %p865, %s31, 1
        %p867 = scmp.lt.s32.totalorder %s33, 1
        %s868 = scalar_select %p867, %s33, 1
        %p869 = scmp.lt.s32.totalorder %s864, 31
        %s870 = scalar_select %p869, %s864, 31
        %s871 = smul.addr %s868, 32
        %s872 = sadd.s32 %s870, %s871
        %s873 = smul.addr %s866, 64
        %s874 = sadd.s32 %s872, %s873
        %s875 = smul.addr %s874, 8
        %s876 = scalar_lea.vmem %s3, %s875
        %s877 = smul.u32 16, %s32
        %p878 = scmp.lt.s32.totalorder %s31, 1
        %s879 = scalar_select %p878, %s31, 1
        %p880 = scmp.lt.s32.totalorder %s33, 1
        %s881 = scalar_select %p880, %s33, 1
        %p882 = scmp.lt.s32.totalorder %s877, 31
        %s883 = scalar_select %p882, %s877, 31
        %s884 = smul.addr %s881, 32
        %s885 = sadd.s32 %s883, %s884
        %s886 = smul.addr %s879, 64
        %s887 = sadd.s32 %s885, %s886
        %s888 = smul.addr %s887, 8
        %s889 = scalar_lea.vmem %s4, %s888
        // Predicated region
        $region45: #{tpu_custom_call.1} parent=27 // pred_check
          %p890 = pneg %p131
        $region46: #{tpu_custom_call.1} parent=27 // pred_check_branch
          %892 = sbr.rel (%p890) target = $region48
        $region47: #{tpu_custom_call.1} parent=27 // pred_region
          %s893 = smul.u32 16, %s32
          %s895 = ssub.s32 2048, 2048
          %896 = vsyncadd %s860, %s895
          %s897 = smul.addr %s893, 2
          %s898 = sadd.s32 %s33, %s897
          %s899 = smul.addr %s31, 64
          %s900 = sadd.s32 %s898, %s899
          %s901 = smul.addr %s900, 128
          %s902 = scalar_lea.hbm %s2, %s901
          %s903 = sshll.u32 %s863, 4
          %s904 = int_to_ptr.vmem [resolvable:$true] %s903
          %909 = dma.vmem_to_hbm [thread:$0]  %s904, 2048, %s902, %s860, 128, 256, 8
        $region48: #{tpu_custom_call.1} parent=27 // pred_fallthru
          _
        // Predicated region
        $region49: #{tpu_custom_call.1} parent=27 // pred_check
          %p910 = pneg %p161
        $region50: #{tpu_custom_call.1} parent=27 // pred_check_branch
          %912 = sbr.rel (%p910) target = $region52
        $region51: #{tpu_custom_call.1} parent=27 // pred_region
          %s913 = smul.u32 16, %s32
        $region52: #{tpu_custom_call.1} parent=27 // pred_fallthru
          _
        // Predicated region
        $region53: #{tpu_custom_call.1} parent=27 // pred_check
          %p914 = pneg %p191
        $region54: #{tpu_custom_call.1} parent=27 // pred_check_branch
          %916 = sbr.rel (%p914) target = $region56
        $region55: #{tpu_custom_call.1} parent=27 // pred_region
          %s917 = smul.u32 16, %s32
        $region56: #{tpu_custom_call.1} parent=27 // pred_fallthru
          _
      $region28: #{tpu_custom_call.1} parent=5 // pred_fallthru
        _
      %p918 = scmp.le.s32.totalorder 2, %s20
      // Predicated region
      $region57: #{tpu_custom_call.1} parent=5 // pred_check
        %p919 = pneg %p918
      $region58: #{tpu_custom_call.1} parent=5 // pred_check_branch
        %921 = sbr.rel (%p919) target = $region60
      $region59: #{tpu_custom_call.1} parent=5 // pred_region
        %s922 = ssub.s32 %s20, 2
        // Predicated region
        $region61: #{tpu_custom_call.1} parent=59 // pred_check
          %p923 = pneg %p137
        $region62: #{tpu_custom_call.1} parent=59 // pred_check_branch
          %925 = sbr.rel (%p923) target = $region64
        $region63: #{tpu_custom_call.1} parent=59 // pred_region
          %s926 = sand.u32 %s122, 1
          %s927 = scalar_lea.sflag [#allocation5], %s926
          %s928 = sand.u32 %s122, 1
          %s929 = smul.addr %s928, 128
          %s930 = scalar_lea.vmem [#allocation8], %s929
          %931 = dma.done %s927, 2048
        $region64: #{tpu_custom_call.1} parent=59 // pred_fallthru
          _
        // Predicated region
        $region65: #{tpu_custom_call.1} parent=59 // pred_check
          %p932 = pneg %p167
        $region66: #{tpu_custom_call.1} parent=59 // pred_check_branch
          %934 = sbr.rel (%p932) target = $region68
        $region67: #{tpu_custom_call.1} parent=59 // pred_region
          %s935 = smul.u32 16, %s36
          %p936 = scmp.lt.s32.totalorder %s35, 1
          %s937 = scalar_select %p936, %s35, 1
          %p938 = scmp.lt.s32.totalorder %s37, 1
          %s939 = scalar_select %p938, %s37, 1
          %p940 = scmp.lt.s32.totalorder %s935, 31
          %s941 = scalar_select %p940, %s935, 31
          %s942 = smul.addr %s939, 32
          %s943 = sadd.s32 %s941, %s942
          %s944 = smul.addr %s937, 64
          %s945 = sadd.s32 %s943, %s944
          %s946 = smul.addr %s945, 8
          %s947 = scalar_lea.vmem %s3, %s946
        $region68: #{tpu_custom_call.1} parent=59 // pred_fallthru
          _
        // Predicated region
        $region69: #{tpu_custom_call.1} parent=59 // pred_check
          %p948 = pneg %p197
        $region70: #{tpu_custom_call.1} parent=59 // pred_check_branch
          %950 = sbr.rel (%p948) target = $region72
        $region71: #{tpu_custom_call.1} parent=59 // pred_region
          %s951 = smul.u32 16, %s36
          %p952 = scmp.lt.s32.totalorder %s35, 1
          %s953 = scalar_select %p952, %s35, 1
          %p954 = scmp.lt.s32.totalorder %s37, 1
          %s955 = scalar_select %p954, %s37, 1
          %p956 = scmp.lt.s32.totalorder %s951, 31
          %s957 = scalar_select %p956, %s951, 31
          %s958 = smul.addr %s955, 32
          %s959 = sadd.s32 %s957, %s958
          %s960 = smul.addr %s953, 64
          %s961 = sadd.s32 %s959, %s960
          %s962 = smul.addr %s961, 8
          %s963 = scalar_lea.vmem %s4, %s962
        $region72: #{tpu_custom_call.1} parent=59 // pred_fallthru
          _
      $region60: #{tpu_custom_call.1} parent=5 // pred_fallthru
        _
    $region6: #{tpu_custom_call.1} parent=1 // loop_footer
      %s24 = sadd.s32 1, %s20
    $region7: #{tpu_custom_call.1} parent=1 // loop_footer_branch
      %19 = sbr.rel target = $region3
    $region8: #{tpu_custom_call.1} parent=1 // loop_exit
      _
    %964 = vsyncpa [#allocation4], 1
    %s965 = scalar_lea.sflag [#allocation4], 1
    %966 = vsyncpa %s965, 1
    %967 = vsyncpa [#allocation7], 1
    %s968 = scalar_lea.sflag [#allocation7], 1
    %969 = vsyncpa %s968, 1
    %970 = vsyncpa [#allocation5], 1
    %s971 = scalar_lea.sflag [#allocation5], 1
    %972 = vsyncpa %s971, 1

</llo_original>
